<compile_context>
chip_gen: v5e
topology: v5e:2x2
jax: 0.10.0
libtpu: 0.0.40
codegen_flags: <defaults>
</compile_context>

<pallas_src>
import functools

import jax
import jax.numpy as jnp
from jax.experimental import pallas as pl
from jax.experimental.pallas import tpu as pltpu


# ------------------------------ math helpers ------------------------------

def _layer_norm(v, g, b, eps=1e-5):
    # torch.nn.LayerNorm semantics (biased variance, eps inside rsqrt), in f32.
    mu = jnp.mean(v, axis=-1, keepdims=True)
    var = jnp.mean((v - mu) ** 2, axis=-1, keepdims=True)
    return (v - mu) * jax.lax.rsqrt(var + eps) * g + b


def _erf(x, approx_recip=False):
    # Abramowitz & Stegun 7.1.26 rational approximation (max abs err ~1.5e-7
    # vs torch's exact erf); exp/mul/add/abs/sign only -> guaranteed lowering.
    a1, a2, a3, a4, a5 = (0.254829592, -0.284496736, 1.421413741,
                          -1.453152027, 1.061405429)
    pc = 0.3275911
    sgn = jnp.sign(x)
    ax = jnp.abs(x)
    # reciprocal on the EUP slot (approx on the bf16 production path).
    t = pl.reciprocal(1.0 + pc * ax, approx=approx_recip)
    poly = ((((a5 * t + a4) * t + a3) * t + a2) * t + a1) * t
    return sgn * (1.0 - poly * jnp.exp(-ax * ax))


def _gelu_exact(x, approx_recip=False):
    # nn.GELU() default = exact erf GELU.  Math kept in f32 (mandatory on v5e).
    return 0.5 * x * (1.0 + _erf(x * (2.0 ** -0.5), approx_recip))


# ------------------------------- kernels ----------------------------------

def qkv_proj_kernel(x_ref, ln1_g, ln1_b, wqkv, bqkv,
                    q_out, k_out, v_out, *, n_head):
    """LN1 + fused QKV projection for one (1, tt, C) token tile.
    Writes head-split (H, tt, D) blocks so the attention pass never reshapes
    or transposes full K/V again."""
    _, tt, C = x_ref.shape
    H = n_head
    D = C // H
    cdt = wqkv.dtype                              # matmul dtype (f32 or bf16)

    xn = _layer_norm(x_ref[0], ln1_g[...], ln1_b[...])                # (tt,C)
    qkv = jnp.dot(xn.astype(cdt), wqkv[...],
                  preferred_element_type=jnp.float32) + bqkv[...]     # (tt,3C)

    # Head-split relayout happens HERE, exactly once per token.
    for h in range(H):                   # static loop, 2-D lane slices only
        q_out[0, h] = qkv[:, h * D:(h + 1) * D].astype(q_out.dtype)
        k_out[0, h] = qkv[:, C + h * D:C + (h + 1) * D].astype(k_out.dtype)
        v_out[0, h] = qkv[:, 2 * C + h * D:2 * C + (h + 1) * D].astype(v_out.dtype)


def attention_kernel(x_ref, q_ref, k_ref, v_ref, wo, bo, x1_ref,
                     m_s, l_s, acc_s, *, approx_recip):
    """Flash-style attention for one (b, q-tile); k-tiles iterate on the
    innermost 'arbitrary' grid axis with online-softmax scratch."""
    ki = pl.program_id(2)
    _, H, tq, D = q_ref.shape
    C = H * D
    cdt = wo.dtype

    @pl.when(ki == 0)
    def _():
        m_s[...] = jnp.full(m_s.shape, -jnp.inf, m_s.dtype)
        l_s[...] = jnp.zeros(l_s.shape, l_s.dtype)
        acc_s[...] = jnp.zeros(acc_s.shape, acc_s.dtype)

    q = q_ref[0]                                   # (H, tq, D)
    k = k_ref[0]                                   # (H, tk, D)
    v = v_ref[0]                                   # (H, tk, D)

    # D**-0.5 already folded into wq/bq offline -> raw dot is the scaled score.
    s = jnp.einsum('hqd,hkd->hqk', q, k,
                   preferred_element_type=jnp.float32)              # (H,tq,tk)
    m_new = jnp.maximum(m_s[...], jnp.max(s, axis=-1, keepdims=True))
    a = jnp.exp(m_s[...] - m_new)
    p = jnp.exp(s - m_new)
    l_s[...] = a * l_s[...] + jnp.sum(p, axis=-1, keepdims=True)
    acc_s[...] = a * acc_s[...] + jnp.einsum(
        'hqk,hkd->hqd', p.astype(cdt), v, preferred_element_type=jnp.float32)
    m_s[...] = m_new

    @pl.when(ki == pl.num_programs(2) - 1)
    def _():
        inv = pl.reciprocal(l_s[...], approx=approx_recip)           # (H,tq,1)
        ctx = acc_s[...] * inv                                       # (H,tq,D)
        # merge heads back to (tq, C) once per q-tile (column order = head h
        # at columns h*D:(h+1)*D, matching wo's row order).
        ctx2 = jnp.concatenate([ctx[h] for h in range(H)], axis=-1)
        attn = jnp.dot(ctx2.astype(cdt), wo[...],
                       preferred_element_type=jnp.float32) + bo[...]
        x1_ref[0] = (x_ref[0] + attn).astype(x1_ref.dtype)           # residual


def mlp_kernel(x1_ref, ln2_g, ln2_b, w1, b1, w2, b2, out_ref, *, approx_recip):
    """LN2 + MLP (exact-erf GELU) + residual for one (1, tt, C) token tile."""
    cdt = w1.dtype
    x1 = x1_ref[0]                                                   # (tt, C)
    xn = _layer_norm(x1, ln2_g[...], ln2_b[...])
    h1 = jnp.dot(xn.astype(cdt), w1[...],
                 preferred_element_type=jnp.float32) + b1[...]
    g = _gelu_exact(h1, approx_recip)
    m = jnp.dot(g.astype(cdt), w2[...],
                preferred_element_type=jnp.float32) + b2[...]
    out_ref[0] = (x1 + m).astype(out_ref.dtype)


# ------------------------ parameter transform (offline) --------------------

def prepare_params(raw, n_head, compute_dtype=jnp.float32):
    """One-time parameter transform: fold D**-0.5 into wq/bq (matches the
    reference's D**-0.25-on-q-and-k), fuse wq|wk|wv -> (C,3C) with zero K
    bias, cast matmul weights to the compute dtype; LN params / biases f32."""
    C = raw["wq"].shape[0]
    D = C // n_head
    scale = float(D) ** -0.5
    f32 = jnp.float32
    wqkv = jnp.concatenate([raw["wq"].astype(f32) * scale,
                            raw["wk"].astype(f32),
                            raw["wv"].astype(f32)], axis=1)
    bqkv = jnp.concatenate([raw["bq"].astype(f32) * scale,
                            jnp.zeros((1, C), f32),
                            raw["bv"].astype(f32)], axis=1)
    cd = compute_dtype
    return {
        "ln1_g": raw["ln1_g"].astype(f32), "ln1_b": raw["ln1_b"].astype(f32),
        "wqkv": wqkv.astype(cd), "bqkv": bqkv,
        "wo": raw["wo"].astype(cd), "bo": raw["bo"].astype(f32),
        "ln2_g": raw["ln2_g"].astype(f32), "ln2_b": raw["ln2_b"].astype(f32),
        "w1": raw["w1"].astype(cd), "b1": raw["b1"].astype(f32),
        "w2": raw["w2"].astype(cd), "b2": raw["b2"].astype(f32),
    }


# --------------------------------- wrapper ----------------------------------

def _pick_tile(T, target):
    if T <= target:
        return T
    if T % target == 0:
        return target
    best = 0
    for t in range(8, target + 1, 8):      # keep the sublane dim 8-aligned
        if T % t == 0:
            best = t
    if best:
        return best
    # TODO(synk): masked tail tiles (grid = pl.cdiv) for awkward T instead of
    # falling back to a full-sequence tile.
    return T


def _vmem_limit_bytes():
    cap = 128 * 1024 * 1024
    try:
        # 128 MiB on v5e/v6e, 64 MiB on v7x.
        cap = int(pltpu.get_tpu_info().vmem_capacity_bytes)
    except Exception:
        pass   # hardware query only -- kernel compile errors are never masked
    return cap - cap // 8          # ~12.5% headroom (~112 MiB v6e, ~56 MiB v7x)


def residual_attention_block(x, params, n_head, *,
                             seq_tile=256, q_tile=256, k_tile=256):
    B, T, C = x.shape
    H = n_head
    assert C % H == 0
    D = C // H
    cdt = params["wqkv"].dtype
    approx_recip = bool(cdt == jnp.bfloat16)   # EUP approx recip on prod path

    tt = _pick_tile(T, seq_tile)
    tq = _pick_tile(T, q_tile)
    tk = _pick_tile(T, k_tile)
    vmem_limit = _vmem_limit_bytes()

    def const_spec2(p):
        z = (0,) * p.ndim
        return pl.BlockSpec(p.shape, lambda b, t, z=z: z)

    def const_spec3(p):
        z = (0,) * p.ndim
        return pl.BlockSpec(p.shape, lambda b, qi, ki, z=z: z)

    # ----- pass 1: LN1 + fused QKV, head-split (B, H, T, D) outputs ---------
    qkv_call = pl.pallas_call(
        functools.partial(qkv_proj_kernel, n_head=H),
        grid=(B, T // tt),
        in_specs=[pl.BlockSpec((1, tt, C), lambda b, t: (b, t, 0)),
                  const_spec2(params["ln1_g"]), const_spec2(params["ln1_b"]),
                  const_spec2(params["wqkv"]), const_spec2(params["bqkv"])],
        out_specs=[pl.BlockSpec((1, H, tt, D), lambda b, t: (b, 0, t, 0))] * 3,
        out_shape=[jax.ShapeDtypeStruct((B, H, T, D), cdt)] * 3,
        compiler_params=pltpu.CompilerParams(
            dimension_semantics=("parallel", "parallel"),
            vmem_limit_bytes=vmem_limit),
    )
    q, k, v = qkv_call(x, params["ln1_g"], params["ln1_b"],
                       params["wqkv"], params["bqkv"])

    # ----- pass 2: flash-style attention + out proj + residual --------------
    attn_call = pl.pallas_call(
        functools.partial(attention_kernel, approx_recip=approx_recip),
        grid=(B, T // tq, T // tk),
        in_specs=[pl.BlockSpec((1, tq, C), lambda b, qi, ki: (b, qi, 0)),
                  pl.BlockSpec((1, H, tq, D), lambda b, qi, ki: (b, 0, qi, 0)),
                  pl.BlockSpec((1, H, tk, D), lambda b, qi, ki: (b, 0, ki, 0)),
                  pl.BlockSpec((1, H, tk, D), lambda b, qi, ki: (b, 0, ki, 0)),
                  const_spec3(params["wo"]), const_spec3(params["bo"])],
        out_specs=pl.BlockSpec((1, tq, C), lambda b, qi, ki: (b, qi, 0)),
        out_shape=jax.ShapeDtypeStruct((B, T, C), jnp.float32),
        scratch_shapes=[pltpu.VMEM((H, tq, 1), jnp.float32),   # running max m
                        pltpu.VMEM((H, tq, 1), jnp.float32),   # running sum l
                        pltpu.VMEM((H, tq, D), jnp.float32)],  # acc
        compiler_params=pltpu.CompilerParams(
            dimension_semantics=("parallel", "parallel", "arbitrary"),
            vmem_limit_bytes=vmem_limit),
    )
    x1 = attn_call(x, q, k, v, params["wo"], params["bo"])

    # ----- pass 3: LN2 + MLP + residual --------------------------------------
    mlp_call = pl.pallas_call(
        functools.partial(mlp_kernel, approx_recip=approx_recip),
        grid=(B, T // tt),
        in_specs=[pl.BlockSpec((1, tt, C), lambda b, t: (b, t, 0)),
                  const_spec2(params["ln2_g"]), const_spec2(params["ln2_b"]),
                  const_spec2(params["w1"]), const_spec2(params["b1"]),
                  const_spec2(params["w2"]), const_spec2(params["b2"])],
        out_specs=pl.BlockSpec((1, tt, C), lambda b, t: (b, t, 0)),
        out_shape=jax.ShapeDtypeStruct((B, T, C), jnp.float32),
        compiler_params=pltpu.CompilerParams(
            dimension_semantics=("parallel", "parallel"),
            vmem_limit_bytes=vmem_limit),
    )
    return mlp_call(x1, params["ln2_g"], params["ln2_b"],
                    params["w1"], params["b1"], params["w2"], params["b2"])


# ----------------------------- pure-JAX reference ---------------------------

def reference(x, p, n_head):
    def ln(v, g, b, eps=1e-5):
        mu = v.mean(-1, keepdims=True)
        var = ((v - mu) ** 2).mean(-1, keepdims=True)
        return (v - mu) / jnp.sqrt(var + eps) * g + b

    B, T, C = x.shape
    D = C // n_head
    scale = D ** (-0.25)

    xn = ln(x, p["ln1_g"], p["ln1_b"])
    q = xn @ p["wq"] + p["bq"]
    k = xn @ p["wk"]
    v = xn @ p["wv"] + p["bv"]
    q = q.reshape(B, T, n_head, D).transpose(0, 2, 1, 3) * scale
    k = k.reshape(B, T, n_head, D).transpose(0, 2, 3, 1) * scale
    v = v.reshape(B, T, n_head, D).transpose(0, 2, 1, 3)
    w = jax.nn.softmax((q @ k).astype(jnp.float32), axis=-1)
    wv = (w @ v).transpose(0, 2, 1, 3).reshape(B, T, C)
    x1 = x + wv @ p["wo"] + p["bo"]

    xn2 = ln(x1, p["ln2_g"], p["ln2_b"])
    h1 = xn2 @ p["w1"] + p["b1"]
    g = jax.nn.gelu(h1, approximate=False)
    return x1 + g @ p["w2"] + p["b2"]


# ------------------------------------ main ----------------------------------

if __name__ == "__main__":
    B, T, C, H = 2, 8, 32, 4          # batch, seq, n_state, n_head
    n_mlp = 4 * C

    key = jax.random.PRNGKey(0)
    keys = jax.random.split(key, 12)

    def w(k_, shape, s=0.05):
        return s * jax.random.normal(k_, shape, jnp.float32)

    # Linear weights stored pre-transposed to (in_features, out_features).
    raw = {
        "ln1_g": jnp.ones((1, C), jnp.float32),
        "ln1_b": jnp.zeros((1, C), jnp.float32),
        "wq": w(keys[0], (C, C)), "bq": w(keys[1], (1, C)),
        "wk": w(keys[2], (C, C)),
        "wv": w(keys[3], (C, C)), "bv": w(keys[4], (1, C)),
        "wo": w(keys[5], (C, C)), "bo": w(keys[6], (1, C)),
        "ln2_g": jnp.ones((1, C), jnp.float32),
        "ln2_b": jnp.zeros((1, C), jnp.float32),
        "w1": w(keys[7], (C, n_mlp)), "b1": w(keys[8], (1, n_mlp)),
        "w2": w(keys[9], (n_mlp, C)), "b2": w(keys[10], (1, C)),
    }
    x = jax.random.normal(keys[11], (B, T, C), jnp.float32)

    ref = reference(x, raw, H)

    # f32 compute path: tight tolerance vs. f32 reference.
    out32 = residual_attention_block(x, prepare_params(raw, H, jnp.float32), H)
    out32 = jax.block_until_ready(out32)
    assert out32.shape == (B, T, C)
    err32 = float(jnp.max(jnp.abs(out32 - ref)))
    assert jnp.allclose(out32, ref, atol=1e-4, rtol=1e-4), err32

    # bf16-matmul / f32-accumulate production path: looser tolerance.
    outbf = residual_attention_block(x, prepare_params(raw, H, jnp.bfloat16), H)
    outbf = jax.block_until_ready(outbf)
    errbf = float(jnp.max(jnp.abs(outbf - ref)))
    assert jnp.allclose(outbf, ref, atol=2e-2, rtol=2e-2), errbf

    print("KERNEL_OK")
</pallas_src>

<mosaic_0001>
module attributes {stable_mosaic.version = 11 : i64} {
  func.func @qkv_proj_kernel(%arg0: i32, %arg1: i32, %arg2: memref<1x8x32xf32, #tpu.memory_space<vmem>>, %arg3: memref<1x32xf32, #tpu.memory_space<vmem>>, %arg4: memref<1x32xf32, #tpu.memory_space<vmem>>, %arg5: memref<32x96xf32, #tpu.memory_space<vmem>>, %arg6: memref<1x96xf32, #tpu.memory_space<vmem>>, %arg7: memref<1x4x8x8xf32, #tpu.memory_space<vmem>>, %arg8: memref<1x4x8x8xf32, #tpu.memory_space<vmem>>, %arg9: memref<1x4x8x8xf32, #tpu.memory_space<vmem>>) attributes {dimension_semantics = [#tpu.dimension_semantics<parallel>, #tpu.dimension_semantics<parallel>], iteration_bounds = array<i64: 2, 1>, scalar_prefetch = 0 : i64, scratch_operands = 0 : i64, tpu.core_type = #tpu.core_type<tc>, window_params = [{transform_indices = @transform_0, window_bounds = array<i64: 1, 8, 32>}, {pipeline_mode = #tpu.pipeline_mode<synchronous>, transform_indices = @transform_1, window_bounds = array<i64: 1, 32>}, {pipeline_mode = #tpu.pipeline_mode<synchronous>, transform_indices = @transform_2, window_bounds = array<i64: 1, 32>}, {pipeline_mode = #tpu.pipeline_mode<synchronous>, transform_indices = @transform_3, window_bounds = array<i64: 32, 96>}, {pipeline_mode = #tpu.pipeline_mode<synchronous>, transform_indices = @transform_4, window_bounds = array<i64: 1, 96>}, {transform_indices = @transform_5, window_bounds = array<i64: 1, 4, 8, 8>}, {transform_indices = @transform_6, window_bounds = array<i64: 1, 4, 8, 8>}, {transform_indices = @transform_7, window_bounds = array<i64: 1, 4, 8, 8>}]} {
    %c0 = arith.constant 0 : index
    %c0_0 = arith.constant 0 : index
    %c0_1 = arith.constant 0 : index
    %0 = vector.load %arg2[%c0, %c0_0, %c0_1] : memref<1x8x32xf32, #tpu.memory_space<vmem>>, vector<1x8x32xf32>
    %1 = vector.shape_cast %0 : vector<1x8x32xf32> to vector<8x32xf32>
    %c0_2 = arith.constant 0 : index
    %c0_3 = arith.constant 0 : index
    %2 = vector.load %arg3[%c0_2, %c0_3] : memref<1x32xf32, #tpu.memory_space<vmem>>, vector<1x32xf32>
    %c0_4 = arith.constant 0 : index
    %c0_5 = arith.constant 0 : index
    %3 = vector.load %arg4[%c0_4, %c0_5] : memref<1x32xf32, #tpu.memory_space<vmem>>, vector<1x32xf32>
    %cst = arith.constant dense<0.000000e+00> : vector<8xf32>
    %4 = vector.multi_reduction <add>, %1, %cst [1] : vector<8x32xf32> to vector<8xf32>
    %5 = vector.shape_cast %4 : vector<8xf32> to vector<8x1xf32>
    %cst_6 = arith.constant 3.200000e+01 : f32
    %6 = vector.broadcast %cst_6 : f32 to vector<8x1xf32>
    %7 = arith.divf %5, %6 : vector<8x1xf32>
    %8 = vector.broadcast %7 : vector<8x1xf32> to vector<8x32xf32>
    %9 = arith.subf %1, %8 : vector<8x32xf32>
    %10 = arith.mulf %9, %9 : vector<8x32xf32>
    %cst_7 = arith.constant dense<0.000000e+00> : vector<8xf32>
    %11 = vector.multi_reduction <add>, %10, %cst_7 [1] : vector<8x32xf32> to vector<8xf32>
    %12 = vector.shape_cast %11 : vector<8xf32> to vector<8x1xf32>
    %cst_8 = arith.constant 3.200000e+01 : f32
    %13 = vector.broadcast %cst_8 : f32 to vector<8x1xf32>
    %14 = arith.divf %12, %13 : vector<8x1xf32>
    %15 = vector.broadcast %7 : vector<8x1xf32> to vector<8x32xf32>
    %16 = arith.subf %1, %15 : vector<8x32xf32>
    %cst_9 = arith.constant 9.99999974E-6 : f32
    %17 = vector.broadcast %cst_9 : f32 to vector<8x1xf32>
    %18 = arith.addf %14, %17 : vector<8x1xf32>
    %19 = math.rsqrt %18 : vector<8x1xf32>
    %20 = vector.broadcast %19 : vector<8x1xf32> to vector<8x32xf32>
    %21 = arith.mulf %16, %20 : vector<8x32xf32>
    %22 = vector.broadcast %2 : vector<1x32xf32> to vector<8x32xf32>
    %23 = arith.mulf %21, %22 : vector<8x32xf32>
    %24 = vector.broadcast %3 : vector<1x32xf32> to vector<8x32xf32>
    %25 = arith.addf %23, %24 : vector<8x32xf32>
    %c0_10 = arith.constant 0 : index
    %c0_11 = arith.constant 0 : index
    %26 = vector.load %arg5[%c0_10, %c0_11] : memref<32x96xf32, #tpu.memory_space<vmem>>, vector<32x96xf32>
    %cst_12 = arith.constant dense<0.000000e+00> : vector<8x96xf32>
    %27 = tpu.matmul %25, %26, %cst_12 {dimension_numbers = #tpu.dot_dimension_numbers<[1], [0], [0], [1], [0, 0, 1, 1], [], []>} : vector<8x32xf32>, vector<32x96xf32>, vector<8x96xf32> -> vector<8x96xf32>
    %c0_13 = arith.constant 0 : index
    %c0_14 = arith.constant 0 : index
    %28 = vector.load %arg6[%c0_13, %c0_14] : memref<1x96xf32, #tpu.memory_space<vmem>>, vector<1x96xf32>
    %29 = vector.broadcast %28 : vector<1x96xf32> to vector<8x96xf32>
    %30 = arith.addf %27, %29 : vector<8x96xf32>
    %31 = vector.extract_strided_slice %30 {offsets = [0, 0], sizes = [8, 8], strides = [1, 1]} : vector<8x96xf32> to vector<8x8xf32>
    %c0_15 = arith.constant 0 : index
    %c0_16 = arith.constant 0 : index
    %c0_17 = arith.constant 0 : index
    %c0_18 = arith.constant 0 : index
    %32 = vector.load %arg7[%c0_15, %c0_16, %c0_17, %c0_18] : memref<1x4x8x8xf32, #tpu.memory_space<vmem>>, vector<1x1x8x8xf32>
    %33 = vector.shape_cast %32 : vector<1x1x8x8xf32> to vector<8x8xf32>
    %34 = vector.shape_cast %31 : vector<8x8xf32> to vector<1x1x8x8xf32>
    tpu.vector_store %arg7[%c0_15, %c0_16, %c0_17, %c0_18], %34 {strides = array<i32>} : memref<1x4x8x8xf32, #tpu.memory_space<vmem>>, vector<1x1x8x8xf32>,
    %35 = vector.extract_strided_slice %30 {offsets = [0, 32], sizes = [8, 8], strides = [1, 1]} : vector<8x96xf32> to vector<8x8xf32>
    %c0_19 = arith.constant 0 : index
    %c0_20 = arith.constant 0 : index
    %c0_21 = arith.constant 0 : index
    %c0_22 = arith.constant 0 : index
    %36 = vector.load %arg8[%c0_19, %c0_20, %c0_21, %c0_22] : memref<1x4x8x8xf32, #tpu.memory_space<vmem>>, vector<1x1x8x8xf32>
    %37 = vector.shape_cast %36 : vector<1x1x8x8xf32> to vector<8x8xf32>
    %38 = vector.shape_cast %35 : vector<8x8xf32> to vector<1x1x8x8xf32>
    tpu.vector_store %arg8[%c0_19, %c0_20, %c0_21, %c0_22], %38 {strides = array<i32>} : memref<1x4x8x8xf32, #tpu.memory_space<vmem>>, vector<1x1x8x8xf32>,
    %39 = vector.extract_strided_slice %30 {offsets = [0, 64], sizes = [8, 8], strides = [1, 1]} : vector<8x96xf32> to vector<8x8xf32>
    %c0_23 = arith.constant 0 : index
    %c0_24 = arith.constant 0 : index
    %c0_25 = arith.constant 0 : index
    %c0_26 = arith.constant 0 : index
    %40 = vector.load %arg9[%c0_23, %c0_24, %c0_25, %c0_26] : memref<1x4x8x8xf32, #tpu.memory_space<vmem>>, vector<1x1x8x8xf32>
    %41 = vector.shape_cast %40 : vector<1x1x8x8xf32> to vector<8x8xf32>
    %42 = vector.shape_cast %39 : vector<8x8xf32> to vector<1x1x8x8xf32>
    tpu.vector_store %arg9[%c0_23, %c0_24, %c0_25, %c0_26], %42 {strides = array<i32>} : memref<1x4x8x8xf32, #tpu.memory_space<vmem>>, vector<1x1x8x8xf32>,
    %43 = vector.extract_strided_slice %30 {offsets = [0, 8], sizes = [8, 8], strides = [1, 1]} : vector<8x96xf32> to vector<8x8xf32>
    %c0_27 = arith.constant 0 : index
    %c1 = arith.constant 1 : index
    %c0_28 = arith.constant 0 : index
    %c0_29 = arith.constant 0 : index
    %44 = vector.load %arg7[%c0_27, %c1, %c0_28, %c0_29] : memref<1x4x8x8xf32, #tpu.memory_space<vmem>>, vector<1x1x8x8xf32>
    %45 = vector.shape_cast %44 : vector<1x1x8x8xf32> to vector<8x8xf32>
    %46 = vector.shape_cast %43 : vector<8x8xf32> to vector<1x1x8x8xf32>
    tpu.vector_store %arg7[%c0_27, %c1, %c0_28, %c0_29], %46 {strides = array<i32>} : memref<1x4x8x8xf32, #tpu.memory_space<vmem>>, vector<1x1x8x8xf32>,
    %47 = vector.extract_strided_slice %30 {offsets = [0, 40], sizes = [8, 8], strides = [1, 1]} : vector<8x96xf32> to vector<8x8xf32>
    %c0_30 = arith.constant 0 : index
    %c1_31 = arith.constant 1 : index
    %c0_32 = arith.constant 0 : index
    %c0_33 = arith.constant 0 : index
    %48 = vector.load %arg8[%c0_30, %c1_31, %c0_32, %c0_33] : memref<1x4x8x8xf32, #tpu.memory_space<vmem>>, vector<1x1x8x8xf32>
    %49 = vector.shape_cast %48 : vector<1x1x8x8xf32> to vector<8x8xf32>
    %50 = vector.shape_cast %47 : vector<8x8xf32> to vector<1x1x8x8xf32>
    tpu.vector_store %arg8[%c0_30, %c1_31, %c0_32, %c0_33], %50 {strides = array<i32>} : memref<1x4x8x8xf32, #tpu.memory_space<vmem>>, vector<1x1x8x8xf32>,
    %51 = vector.extract_strided_slice %30 {offsets = [0, 72], sizes = [8, 8], strides = [1, 1]} : vector<8x96xf32> to vector<8x8xf32>
    %c0_34 = arith.constant 0 : index
    %c1_35 = arith.constant 1 : index
    %c0_36 = arith.constant 0 : index
    %c0_37 = arith.constant 0 : index
    %52 = vector.load %arg9[%c0_34, %c1_35, %c0_36, %c0_37] : memref<1x4x8x8xf32, #tpu.memory_space<vmem>>, vector<1x1x8x8xf32>
    %53 = vector.shape_cast %52 : vector<1x1x8x8xf32> to vector<8x8xf32>
    %54 = vector.shape_cast %51 : vector<8x8xf32> to vector<1x1x8x8xf32>
    tpu.vector_store %arg9[%c0_34, %c1_35, %c0_36, %c0_37], %54 {strides = array<i32>} : memref<1x4x8x8xf32, #tpu.memory_space<vmem>>, vector<1x1x8x8xf32>,
    %55 = vector.extract_strided_slice %30 {offsets = [0, 16], sizes = [8, 8], strides = [1, 1]} : vector<8x96xf32> to vector<8x8xf32>
    %c0_38 = arith.constant 0 : index
    %c2 = arith.constant 2 : index
    %c0_39 = arith.constant 0 : index
    %c0_40 = arith.constant 0 : index
    %56 = vector.load %arg7[%c0_38, %c2, %c0_39, %c0_40] : memref<1x4x8x8xf32, #tpu.memory_space<vmem>>, vector<1x1x8x8xf32>
    %57 = vector.shape_cast %56 : vector<1x1x8x8xf32> to vector<8x8xf32>
    %58 = vector.shape_cast %55 : vector<8x8xf32> to vector<1x1x8x8xf32>
    tpu.vector_store %arg7[%c0_38, %c2, %c0_39, %c0_40], %58 {strides = array<i32>} : memref<1x4x8x8xf32, #tpu.memory_space<vmem>>, vector<1x1x8x8xf32>,
    %59 = vector.extract_strided_slice %30 {offsets = [0, 48], sizes = [8, 8], strides = [1, 1]} : vector<8x96xf32> to vector<8x8xf32>
    %c0_41 = arith.constant 0 : index
    %c2_42 = arith.constant 2 : index
    %c0_43 = arith.constant 0 : index
    %c0_44 = arith.constant 0 : index
    %60 = vector.load %arg8[%c0_41, %c2_42, %c0_43, %c0_44] : memref<1x4x8x8xf32, #tpu.memory_space<vmem>>, vector<1x1x8x8xf32>
    %61 = vector.shape_cast %60 : vector<1x1x8x8xf32> to vector<8x8xf32>
    %62 = vector.shape_cast %59 : vector<8x8xf32> to vector<1x1x8x8xf32>
    tpu.vector_store %arg8[%c0_41, %c2_42, %c0_43, %c0_44], %62 {strides = array<i32>} : memref<1x4x8x8xf32, #tpu.memory_space<vmem>>, vector<1x1x8x8xf32>,
    %63 = vector.extract_strided_slice %30 {offsets = [0, 80], sizes = [8, 8], strides = [1, 1]} : vector<8x96xf32> to vector<8x8xf32>
    %c0_45 = arith.constant 0 : index
    %c2_46 = arith.constant 2 : index
    %c0_47 = arith.constant 0 : index
    %c0_48 = arith.constant 0 : index
    %64 = vector.load %arg9[%c0_45, %c2_46, %c0_47, %c0_48] : memref<1x4x8x8xf32, #tpu.memory_space<vmem>>, vector<1x1x8x8xf32>
    %65 = vector.shape_cast %64 : vector<1x1x8x8xf32> to vector<8x8xf32>
    %66 = vector.shape_cast %63 : vector<8x8xf32> to vector<1x1x8x8xf32>
    tpu.vector_store %arg9[%c0_45, %c2_46, %c0_47, %c0_48], %66 {strides = array<i32>} : memref<1x4x8x8xf32, #tpu.memory_space<vmem>>, vector<1x1x8x8xf32>,
    %67 = vector.extract_strided_slice %30 {offsets = [0, 24], sizes = [8, 8], strides = [1, 1]} : vector<8x96xf32> to vector<8x8xf32>
    %c0_49 = arith.constant 0 : index
    %c3 = arith.constant 3 : index
    %c0_50 = arith.constant 0 : index
    %c0_51 = arith.constant 0 : index
    %68 = vector.load %arg7[%c0_49, %c3, %c0_50, %c0_51] : memref<1x4x8x8xf32, #tpu.memory_space<vmem>>, vector<1x1x8x8xf32>
    %69 = vector.shape_cast %68 : vector<1x1x8x8xf32> to vector<8x8xf32>
    %70 = vector.shape_cast %67 : vector<8x8xf32> to vector<1x1x8x8xf32>
    tpu.vector_store %arg7[%c0_49, %c3, %c0_50, %c0_51], %70 {strides = array<i32>} : memref<1x4x8x8xf32, #tpu.memory_space<vmem>>, vector<1x1x8x8xf32>,
    %71 = vector.extract_strided_slice %30 {offsets = [0, 56], sizes = [8, 8], strides = [1, 1]} : vector<8x96xf32> to vector<8x8xf32>
    %c0_52 = arith.constant 0 : index
    %c3_53 = arith.constant 3 : index
    %c0_54 = arith.constant 0 : index
    %c0_55 = arith.constant 0 : index
    %72 = vector.load %arg8[%c0_52, %c3_53, %c0_54, %c0_55] : memref<1x4x8x8xf32, #tpu.memory_space<vmem>>, vector<1x1x8x8xf32>
    %73 = vector.shape_cast %72 : vector<1x1x8x8xf32> to vector<8x8xf32>
    %74 = vector.shape_cast %71 : vector<8x8xf32> to vector<1x1x8x8xf32>
    tpu.vector_store %arg8[%c0_52, %c3_53, %c0_54, %c0_55], %74 {strides = array<i32>} : memref<1x4x8x8xf32, #tpu.memory_space<vmem>>, vector<1x1x8x8xf32>,
    %75 = vector.extract_strided_slice %30 {offsets = [0, 88], sizes = [8, 8], strides = [1, 1]} : vector<8x96xf32> to vector<8x8xf32>
    %c0_56 = arith.constant 0 : index
    %c3_57 = arith.constant 3 : index
    %c0_58 = arith.constant 0 : index
    %c0_59 = arith.constant 0 : index
    %76 = vector.load %arg9[%c0_56, %c3_57, %c0_58, %c0_59] : memref<1x4x8x8xf32, #tpu.memory_space<vmem>>, vector<1x1x8x8xf32>
    %77 = vector.shape_cast %76 : vector<1x1x8x8xf32> to vector<8x8xf32>
    %78 = vector.shape_cast %75 : vector<8x8xf32> to vector<1x1x8x8xf32>
    tpu.vector_store %arg9[%c0_56, %c3_57, %c0_58, %c0_59], %78 {strides = array<i32>} : memref<1x4x8x8xf32, #tpu.memory_space<vmem>>, vector<1x1x8x8xf32>,
    return
  }
  func.func @transform_0(%arg0: i32, %arg1: i32) -> (i32, i32, i32) {
    %c0_i32 = arith.constant 0 : i32
    %c0_i32_0 = arith.constant 0 : i32
    return %arg0, %arg1, %c0_i32 : i32, i32, i32
  }
  func.func @transform_1(%arg0: i32, %arg1: i32) -> (i32, i32) {
    %c0_i32 = arith.constant 0 : i32
    %c0_i32_0 = arith.constant 0 : i32
    %c0_i32_1 = arith.constant 0 : i32
    return %c0_i32, %c0_i32_0 : i32, i32
  }
  func.func @transform_2(%arg0: i32, %arg1: i32) -> (i32, i32) {
    %c0_i32 = arith.constant 0 : i32
    %c0_i32_0 = arith.constant 0 : i32
    %c0_i32_1 = arith.constant 0 : i32
    return %c0_i32, %c0_i32_0 : i32, i32
  }
  func.func @transform_3(%arg0: i32, %arg1: i32) -> (i32, i32) {
    %c0_i32 = arith.constant 0 : i32
    %c0_i32_0 = arith.constant 0 : i32
    %c0_i32_1 = arith.constant 0 : i32
    return %c0_i32, %c0_i32_0 : i32, i32
  }
  func.func @transform_4(%arg0: i32, %arg1: i32) -> (i32, i32) {
    %c0_i32 = arith.constant 0 : i32
    %c0_i32_0 = arith.constant 0 : i32
    %c0_i32_1 = arith.constant 0 : i32
    return %c0_i32, %c0_i32_0 : i32, i32
  }
  func.func @transform_5(%arg0: i32, %arg1: i32) -> (i32, i32, i32, i32) {
    %c0_i32 = arith.constant 0 : i32
    %c0_i32_0 = arith.constant 0 : i32
    %c0_i32_1 = arith.constant 0 : i32
    return %arg0, %c0_i32, %arg1, %c0_i32_0 : i32, i32, i32, i32
  }
  func.func @transform_6(%arg0: i32, %arg1: i32) -> (i32, i32, i32, i32) {
    %c0_i32 = arith.constant 0 : i32
    %c0_i32_0 = arith.constant 0 : i32
    %c0_i32_1 = arith.constant 0 : i32
    return %arg0, %c0_i32, %arg1, %c0_i32_0 : i32, i32, i32, i32
  }
  func.func @transform_7(%arg0: i32, %arg1: i32) -> (i32, i32, i32, i32) {
    %c0_i32 = arith.constant 0 : i32
    %c0_i32_0 = arith.constant 0 : i32
    %c0_i32_1 = arith.constant 0 : i32
    return %arg0, %c0_i32, %arg1, %c0_i32_0 : i32, i32, i32, i32
  }
}

</mosaic_0001>

<llo_original>
// kernel: tpu_custom_call.1
$region0: #{tpu_custom_call.1}
  #allocation0 [shape = 'u32[]', space=smem, size = 0x4, offset = 0x4, fixed_abs, tag = 'smem constant byte address 0x4 - core index']
  #allocation1 [shape = 'u32[72,128]{1,0:T(1,128)}', space=vmem, size = 0x9000, scoped, tag = 'internal scratch']
  %s0 = inlined_call_operand.hbm [shape: f32[2,8,32], index: 0, kind: input, shape index: {}]
  %s1 = inlined_call_operand.hbm [shape: f32[1,32], index: 1, kind: input, shape index: {}]
  %s2 = inlined_call_operand.vmem [shape: f32[1,32], index: 2, kind: input, shape index: {}]
  %s3 = inlined_call_operand.hbm [shape: f32[32,96], index: 3, kind: input, shape index: {}]
  %s4 = inlined_call_operand.vmem [shape: f32[1,96], index: 4, kind: input, shape index: {}]
  %s5 = inlined_call_operand.hbm [shape: f32[2,4,8,8], index: 5, kind: output, shape index: {0}]
  %s6 = inlined_call_operand.hbm [shape: f32[2,4,8,8], index: 6, kind: output, shape index: {1}]
  %s7 = inlined_call_operand.hbm [shape: f32[2,4,8,8], index: 7, kind: output, shape index: {2}]
  %8 = xla_tuple %s5, %s6, %s7
  %s9 = sld [smem:[#allocation0]]
  $region81: #{tpu_custom_call.1} parent=0
    _
  %s11 = ssub.s32 1, %s9
  %s12 = scalar_select 0, %s11, %s9
  $region1: #{tpu_custom_call.1} parent=0
    #allocation2 [shape = 'u8[8192]{0}', space=vmem, size = 0x2000, scoped, tag = 'input window, operand 0']
    #allocation3 [shape = 's32[2]{0}', space=sflag, size = 0x8, scoped, tag = 'scoped memory for tpu_custom_call.1']
    #allocation4 [shape = 's32[2]{0}', space=sflag, size = 0x8, scoped, tag = 'scoped memory for tpu_custom_call.1']
    #allocation5 [shape = 'u8[512]{0}', space=vmem, size = 0x400, scoped, tag = 'input window, operand 1, single buffered']
    #allocation6 [shape = 's32[1]{0}', space=sflag, size = 0x4, scoped, tag = 'scoped memory for tpu_custom_call.1']
    #allocation7 [shape = 'u8[16384]{0}', space=vmem, size = 0x4000, scoped, tag = 'input window, operand 3, single buffered']
    #allocation8 [shape = 'u8[32768]{0}', space=vmem, size = 0x8000, scoped, tag = 'output window, operand 0']
    #allocation9 [shape = 'u8[32768]{0}', space=vmem, size = 0x8000, scoped, tag = 'output window, operand 1']
    #allocation10 [shape = 's32[2]{0}', space=sflag, size = 0x8, scoped, tag = 'scoped memory for tpu_custom_call.1']
    #allocation11 [shape = 'u8[32768]{0}', space=vmem, size = 0x8000, scoped, tag = 'output window, operand 2']
    %13 = vsyncpa [#allocation3], 0
    %s14 = scalar_lea.sflag [#allocation3], 1
    %15 = vsyncpa %s14, 0
    %16 = vsyncpa [#allocation6], 0
    %17 = vsyncpa [#allocation4], 0
    %s18 = scalar_lea.sflag [#allocation4], 1
    %19 = vsyncpa %s18, 0
    %20 = vsyncpa [#allocation10], 0
    %s21 = scalar_lea.sflag [#allocation10], 1
    %22 = vsyncpa %s21, 0
    loop: start=0, step=1, limit=4
    $region2: #{tpu_custom_call.1} parent=1 // loop_pre_header
      _
    $region3: #{tpu_custom_call.1} parent=1 // loop_header
      %s24 = sphi 0, %s28
      %p25 = scmp.ge.s32.totalorder %s24, 4
      %s31 = sphi 0, %s43
      %s32 = sphi 0, %s39
      %s33 = sphi 0, %s31
      %s34 = sphi 0, %s32
      %s35 = sphi 0, %s33
      %s36 = sphi 0, %s34
      %s48 = sphi 0, %s50
      %s51 = sphi 0, %s48
      %s52 = sphi 0, %s51
      %s68 = sphi 0, %s52
      %s72 = sphi 0, %s72
      %s74 = sphi 0, %s72
      %s75 = sphi 0, %s74
      %s89 = sphi 0, %s75
      %s93 = sphi 0, %s93
      %s95 = sphi 0, %s93
      %s96 = sphi 0, %s95
      %s110 = sphi 0, %s96
      %s114 = sphi 0, %s114
      %s116 = sphi 0, %s114
      %s117 = sphi 0, %s116
      %s131 = sphi 0, %s117
      %s135 = sphi 0, %s135
      %s137 = sphi 0, %s135
      %s138 = sphi 0, %s137
      %s152 = sphi 0, %s138
      %s160 = sphi 0, %s162
      %s163 = sphi 0, %s160
      %s164 = sphi 0, %s163
      %s180 = sphi 0, %s164
      %s188 = sphi 0, %s190
      %s191 = sphi 0, %s188
      %s192 = sphi 0, %s191
      %s208 = sphi 0, %s192
      %s216 = sphi 0, %s218
      %s219 = sphi 0, %s216
      %s220 = sphi 0, %s219
      %s236 = sphi 0, %s220
    $region4: #{tpu_custom_call.1} parent=1 // loop_header_branch
      %27 = sbr.rel (%p25) target = $region8
    $region5: #{tpu_custom_call.1} parent=1 // loop_body
      %s29 = ssub.s32 %s24, 1
      %s30 = ssub.s32 %s24, 2
      %s37 = sadd.s32 1, %s32
      %p38 = scmp.ge.s32.totalorder %s37, 1
      %s39 = scalar_select %p38, 0, %s37
      %s40 = sadd.s32 1, %s31
      %s41 = scalar_select %p38, %s40, %s31
      %p42 = scmp.ge.s32.totalorder %s41, 2
      %s43 = scalar_select %p42, 0, %s41
      %s44 = ssub.s32 %s31, %s43
      %s45 = ssub.s32 %s32, %s39
      %s46 = sor.u32 %s44, %s45
      %p47 = scmp.eq.s32.totalorder %s46, 0
      %s49 = sadd.s32 %s48, 1
      %s50 = scalar_select %p47, %s48, %s49
      %p53 = pneg %p47
      %p54 = scmp.eq.s32.totalorder %s24, 1
      %p55 = por %p53, %p54
      %p56 = scmp.ne.s32.totalorder %s48, %s51
      %p57 = scmp.eq.s32.totalorder %s24, 0
      %p58 = por %p56, %p57
      %p59 = scmp.ne.s32.totalorder %s48, %s51
      %p60 = scmp.eq.s32.totalorder %s29, 1
      %p61 = por %p59, %p60
      %p62 = scmp.ne.s32.totalorder %s51, %s52
      %p63 = scmp.eq.s32.totalorder %s29, 0
      %p64 = por %p62, %p63
      %p65 = scmp.ne.s32.totalorder %s51, %s52
      %p66 = scmp.eq.s32.totalorder %s30, 1
      %p67 = por %p65, %p66
      %p69 = scmp.ne.s32.totalorder %s52, %s68
      %p70 = scmp.eq.s32.totalorder %s30, 0
      %p71 = por %p69, %p70
      %s73 = sadd.s32 %s72, 1
      %p76 = scmp.eq.s32.totalorder %s24, 1
      %p77 = scmp.ne.s32.totalorder %s72, %s74
      %p78 = scmp.eq.s32.totalorder %s24, 0
      %p79 = por %p77, %p78
      %p80 = scmp.ne.s32.totalorder %s72, %s74
      %p81 = scmp.eq.s32.totalorder %s29, 1
      %p82 = por %p80, %p81
      %p83 = scmp.ne.s32.totalorder %s74, %s75
      %p84 = scmp.eq.s32.totalorder %s29, 0
      %p85 = por %p83, %p84
      %p86 = scmp.ne.s32.totalorder %s74, %s75
      %p87 = scmp.eq.s32.totalorder %s30, 1
      %p88 = por %p86, %p87
      %p90 = scmp.ne.s32.totalorder %s75, %s89
      %p91 = scmp.eq.s32.totalorder %s30, 0
      %p92 = por %p90, %p91
      %s94 = sadd.s32 %s93, 1
      %p97 = scmp.eq.s32.totalorder %s24, 1
      %p98 = scmp.ne.s32.totalorder %s93, %s95
      %p99 = scmp.eq.s32.totalorder %s24, 0
      %p100 = por %p98, %p99
      %p101 = scmp.ne.s32.totalorder %s93, %s95
      %p102 = scmp.eq.s32.totalorder %s29, 1
      %p103 = por %p101, %p102
      %p104 = scmp.ne.s32.totalorder %s95, %s96
      %p105 = scmp.eq.s32.totalorder %s29, 0
      %p106 = por %p104, %p105
      %p107 = scmp.ne.s32.totalorder %s95, %s96
      %p108 = scmp.eq.s32.totalorder %s30, 1
      %p109 = por %p107, %p108
      %p111 = scmp.ne.s32.totalorder %s96, %s110
      %p112 = scmp.eq.s32.totalorder %s30, 0
      %p113 = por %p111, %p112
      %s115 = sadd.s32 %s114, 1
      %p118 = scmp.eq.s32.totalorder %s24, 1
      %p119 = scmp.ne.s32.totalorder %s114, %s116
      %p120 = scmp.eq.s32.totalorder %s24, 0
      %p121 = por %p119, %p120
      %p122 = scmp.ne.s32.totalorder %s114, %s116
      %p123 = scmp.eq.s32.totalorder %s29, 1
      %p124 = por %p122, %p123
      %p125 = scmp.ne.s32.totalorder %s116, %s117
      %p126 = scmp.eq.s32.totalorder %s29, 0
      %p127 = por %p125, %p126
      %p128 = scmp.ne.s32.totalorder %s116, %s117
      %p129 = scmp.eq.s32.totalorder %s30, 1
      %p130 = por %p128, %p129
      %p132 = scmp.ne.s32.totalorder %s117, %s131
      %p133 = scmp.eq.s32.totalorder %s30, 0
      %p134 = por %p132, %p133
      %s136 = sadd.s32 %s135, 1
      %p139 = scmp.eq.s32.totalorder %s24, 1
      %p140 = scmp.ne.s32.totalorder %s135, %s137
      %p141 = scmp.eq.s32.totalorder %s24, 0
      %p142 = por %p140, %p141
      %p143 = scmp.ne.s32.totalorder %s135, %s137
      %p144 = scmp.eq.s32.totalorder %s29, 1
      %p145 = por %p143, %p144
      %p146 = scmp.ne.s32.totalorder %s137, %s138
      %p147 = scmp.eq.s32.totalorder %s29, 0
      %p148 = por %p146, %p147
      %p149 = scmp.ne.s32.totalorder %s137, %s138
      %p150 = scmp.eq.s32.totalorder %s30, 1
      %p151 = por %p149, %p150
      %p153 = scmp.ne.s32.totalorder %s138, %s152
      %p154 = scmp.eq.s32.totalorder %s30, 0
      %p155 = por %p153, %p154
      %s156 = ssub.s32 %s31, %s43
      %s157 = ssub.s32 %s32, %s39
      %s158 = sor.u32 %s156, %s157
      %p159 = scmp.eq.s32.totalorder %s158, 0
      %s161 = sadd.s32 %s160, 1
      %s162 = scalar_select %p159, %s160, %s161
      %p165 = pneg %p159
      %p166 = scmp.eq.s32.totalorder %s24, 1
      %p167 = por %p165, %p166
      %p168 = scmp.ne.s32.totalorder %s160, %s163
      %p169 = scmp.eq.s32.totalorder %s24, 0
      %p170 = por %p168, %p169
      %p171 = scmp.ne.s32.totalorder %s160, %s163
      %p172 = scmp.eq.s32.totalorder %s29, 1
      %p173 = por %p171, %p172
      %p174 = scmp.ne.s32.totalorder %s163, %s164
      %p175 = scmp.eq.s32.totalorder %s29, 0
      %p176 = por %p174, %p175
      %p177 = scmp.ne.s32.totalorder %s163, %s164
      %p178 = scmp.eq.s32.totalorder %s30, 1
      %p179 = por %p177, %p178
      %p181 = scmp.ne.s32.totalorder %s164, %s180
      %p182 = scmp.eq.s32.totalorder %s30, 0
      %p183 = por %p181, %p182
      %s184 = ssub.s32 %s31, %s43
      %s185 = ssub.s32 %s32, %s39
      %s186 = sor.u32 %s184, %s185
      %p187 = scmp.eq.s32.totalorder %s186, 0
      %s189 = sadd.s32 %s188, 1
      %s190 = scalar_select %p187, %s188, %s189
      %p193 = pneg %p187
      %p194 = scmp.eq.s32.totalorder %s24, 1
      %p195 = por %p193, %p194
      %p196 = scmp.ne.s32.totalorder %s188, %s191
      %p197 = scmp.eq.s32.totalorder %s24, 0
      %p198 = por %p196, %p197
      %p199 = scmp.ne.s32.totalorder %s188, %s191
      %p200 = scmp.eq.s32.totalorder %s29, 1
      %p201 = por %p199, %p200
      %p202 = scmp.ne.s32.totalorder %s191, %s192
      %p203 = scmp.eq.s32.totalorder %s29, 0
      %p204 = por %p202, %p203
      %p205 = scmp.ne.s32.totalorder %s191, %s192
      %p206 = scmp.eq.s32.totalorder %s30, 1
      %p207 = por %p205, %p206
      %p209 = scmp.ne.s32.totalorder %s192, %s208
      %p210 = scmp.eq.s32.totalorder %s30, 0
      %p211 = por %p209, %p210
      %s212 = ssub.s32 %s31, %s43
      %s213 = ssub.s32 %s32, %s39
      %s214 = sor.u32 %s212, %s213
      %p215 = scmp.eq.s32.totalorder %s214, 0
      %s217 = sadd.s32 %s216, 1
      %s218 = scalar_select %p215, %s216, %s217
      %p221 = pneg %p215
      %p222 = scmp.eq.s32.totalorder %s24, 1
      %p223 = por %p221, %p222
      %p224 = scmp.ne.s32.totalorder %s216, %s219
      %p225 = scmp.eq.s32.totalorder %s24, 0
      %p226 = por %p224, %p225
      %p227 = scmp.ne.s32.totalorder %s216, %s219
      %p228 = scmp.eq.s32.totalorder %s29, 1
      %p229 = por %p227, %p228
      %p230 = scmp.ne.s32.totalorder %s219, %s220
      %p231 = scmp.eq.s32.totalorder %s29, 0
      %p232 = por %p230, %p231
      %p233 = scmp.ne.s32.totalorder %s219, %s220
      %p234 = scmp.eq.s32.totalorder %s30, 1
      %p235 = por %p233, %p234
      %p237 = scmp.ne.s32.totalorder %s220, %s236
      %p238 = scmp.eq.s32.totalorder %s30, 0
      %p239 = por %p237, %p238
      %p240 = scmp.le.s32.totalorder 1, %s24
      %p241 = scmp.lt.s32.totalorder %s24, 3
      %p242 = pnand %p240, %p241
      %p243 = pneg %p242
      // Predicated region
      $region9: #{tpu_custom_call.1} parent=5 // pred_check
        _
      $region10: #{tpu_custom_call.1} parent=5 // pred_check_branch
        %245 = sbr.rel (%p242) target = $region12
      $region11: #{tpu_custom_call.1} parent=5 // pred_region
        %s246 = ssub.s32 %s24, 1
        // Predicated region
        $region13: #{tpu_custom_call.1} parent=11 // pred_check
          %p247 = pneg %p85
        $region14: #{tpu_custom_call.1} parent=11 // pred_check_branch
          %249 = sbr.rel (%p247) target = $region16
        $region15: #{tpu_custom_call.1} parent=11 // pred_region
          %251 = vsyncadd [#allocation6], 0
          %s253 = sshll.u32 %s1, 4
          %s254 = int_to_ptr.hbm [resolvable:$true] %s253
          %s255 = sshll.u32 [#allocation5], 4
          %s256 = int_to_ptr.vmem [resolvable:$true] %s255
          %258 = dma.hbm_to_vmem [thread:$0]  %s254, 16, %s256, [#allocation6]
        $region16: #{tpu_custom_call.1} parent=11 // pred_fallthru
          _
        // Predicated region
        $region17: #{tpu_custom_call.1} parent=11 // pred_check
          %p259 = pneg %p106
        $region18: #{tpu_custom_call.1} parent=11 // pred_check_branch
          %261 = sbr.rel (%p259) target = $region20
        $region19: #{tpu_custom_call.1} parent=11 // pred_region
          _
        $region20: #{tpu_custom_call.1} parent=11 // pred_fallthru
          _
        // Predicated region
        $region21: #{tpu_custom_call.1} parent=11 // pred_check
          %p262 = pneg %p127
        $region22: #{tpu_custom_call.1} parent=11 // pred_check_branch
          %264 = sbr.rel (%p262) target = $region24
        $region23: #{tpu_custom_call.1} parent=11 // pred_region
          %266 = vsyncadd [#allocation6], 0
          %s267 = sshll.u32 %s3, 4
          %s268 = int_to_ptr.hbm [resolvable:$true] %s267
          %s269 = sshll.u32 [#allocation7], 4
          %s270 = int_to_ptr.vmem [resolvable:$true] %s269
          %275 = dma.hbm_to_vmem [thread:$0]  %s268, 512, %s270, [#allocation6], 128, 128, 8
        $region24: #{tpu_custom_call.1} parent=11 // pred_fallthru
          _
        // Predicated region
        $region25: #{tpu_custom_call.1} parent=11 // pred_check
          %p276 = pneg %p148
        $region26: #{tpu_custom_call.1} parent=11 // pred_check_branch
          %278 = sbr.rel (%p276) target = $region28
        $region27: #{tpu_custom_call.1} parent=11 // pred_region
          _
        $region28: #{tpu_custom_call.1} parent=11 // pred_fallthru
          _
      $region12: #{tpu_custom_call.1} parent=5 // pred_fallthru
        _
      %p279 = scmp.lt.s32.totalorder %s24, 2
      // Predicated region
      $region29: #{tpu_custom_call.1} parent=5 // pred_check
        %p280 = pneg %p279
      $region30: #{tpu_custom_call.1} parent=5 // pred_check_branch
        %282 = sbr.rel (%p280) target = $region32
      $region31: #{tpu_custom_call.1} parent=5 // pred_region
        // Predicated region
        $region33: #{tpu_custom_call.1} parent=31 // pred_check
          %p283 = pneg %p58
        $region34: #{tpu_custom_call.1} parent=31 // pred_check_branch
          %285 = sbr.rel (%p283) target = $region36
        $region35: #{tpu_custom_call.1} parent=31 // pred_region
          %s286 = sand.u32 %s48, 1
          %s287 = scalar_lea.sflag [#allocation3], %s286
          %s288 = sand.u32 %s48, 1
          %s289 = smul.addr %s288, 8
          %s290 = scalar_lea.vmem [#allocation2], %s289
          %292 = vsyncadd %s287, 0
          %s293 = sadd.s32 %s32, %s31
          %s294 = smul.addr %s293, 8
          %s295 = scalar_lea.hbm %s0, %s294
          %s297 = sshll.u32 %s295, 4
          %s298 = int_to_ptr.hbm [resolvable:$true] %s297
          %s299 = sshll.u32 %s290, 4
          %s300 = int_to_ptr.vmem [resolvable:$true] %s299
          %302 = dma.hbm_to_vmem [thread:$0]  %s298, 128, %s300, %s287
        $region36: #{tpu_custom_call.1} parent=31 // pred_fallthru
          _
      $region32: #{tpu_custom_call.1} parent=5 // pred_fallthru
        _
      %p303 = scmp.le.s32.totalorder 1, %s24
      %p304 = scmp.lt.s32.totalorder %s24, 3
      %p305 = pnand %p303, %p304
      %p306 = pneg %p305
      // Predicated region
      $region37: #{tpu_custom_call.1} parent=5 // pred_check
        _
      $region38: #{tpu_custom_call.1} parent=5 // pred_check_branch
        %308 = sbr.rel (%p305) target = $region40
      $region39: #{tpu_custom_call.1} parent=5 // pred_region
        %s309 = ssub.s32 %s24, 1
        %s310 = sand.u32 %s51, 1
        %s311 = scalar_lea.sflag [#allocation3], %s310
        %s312 = sand.u32 %s51, 1
        %s313 = smul.addr %s312, 8
        %s314 = scalar_lea.vmem [#allocation2], %s313
        // Predicated region
        $region41: #{tpu_custom_call.1} parent=39 // pred_check
          %p315 = pneg %p64
        $region42: #{tpu_custom_call.1} parent=39 // pred_check_branch
          %317 = sbr.rel (%p315) target = $region44
        $region43: #{tpu_custom_call.1} parent=39 // pred_region
          %319 = dma.done %s311, 128
        $region44: #{tpu_custom_call.1} parent=39 // pred_fallthru
          _
        // Predicated region
        $region45: #{tpu_custom_call.1} parent=39 // pred_check
          %p320 = pneg %p85
        $region46: #{tpu_custom_call.1} parent=39 // pred_check_branch
          %322 = sbr.rel (%p320) target = $region48
        $region47: #{tpu_custom_call.1} parent=39 // pred_region
          %324 = dma.done [#allocation6], 16
        $region48: #{tpu_custom_call.1} parent=39 // pred_fallthru
          _
        // Predicated region
        $region49: #{tpu_custom_call.1} parent=39 // pred_check
          %p325 = pneg %p127
        $region50: #{tpu_custom_call.1} parent=39 // pred_check_branch
          %327 = sbr.rel (%p325) target = $region52
        $region51: #{tpu_custom_call.1} parent=39 // pred_region
          %329 = dma.done [#allocation6], 512
        $region52: #{tpu_custom_call.1} parent=39 // pred_fallthru
          _
        %s330 = sand.u32 %s51, 1
        %s331 = scalar_lea.sflag [#allocation3], %s330
        %s332 = sand.u32 %s51, 1
        %s333 = smul.addr %s332, 8
        %s334 = scalar_lea.vmem [#allocation2], %s333
        %p335 = pneg %p64
        %p336 = pneg %p61
        %p337 = pneg %p85
        %p338 = pneg %p82
        %p339 = pneg %p106
        %p340 = pneg %p103
        %p341 = pneg %p127
        %p342 = pneg %p124
        %p343 = pneg %p148
        %p344 = pneg %p145
        %p345 = pneg %p176
        %p346 = pneg %p173
        %s347 = sand.u32 %s163, 1
        %s348 = scalar_lea.sflag [#allocation4], %s347
        %s349 = sand.u32 %s163, 1
        %s350 = smul.addr %s349, 32
        %s351 = scalar_lea.vmem [#allocation8], %s350
        %p352 = pneg %p204
        %p353 = pneg %p201
        %s354 = sand.u32 %s29, 1
        %s355 = scalar_lea.sflag [#allocation10], %s354
        %s356 = sand.u32 %s191, 1
        %s357 = smul.addr %s356, 32
        %s358 = scalar_lea.vmem [#allocation9], %s357
        %p359 = pneg %p232
        %p360 = pneg %p229
        %s361 = sand.u32 %s29, 1
        %s362 = scalar_lea.sflag [#allocation10], %s361
        %s363 = sand.u32 %s219, 1
        %s364 = smul.addr %s363, 32
        %s365 = scalar_lea.vmem [#allocation11], %s364
        %v366 = vld [vmem:[%s314] sm:$0xff]
        %v367 = vld [vmem:[#allocation5] sm:$0x1]
        %v368 = vld [vmem:[%s2] sm:$0x1]
        %vm369 = vcmask 261120
        %v370 = vsel %vm369, %v366, 0.0
        %371 = vadd.xlane.f32.xlu0 %v370
        %v372 = vpop.xlane.xlu0 %371
        %v373 = vrcp.pop 32.0
        %v374 = vmul.f32 32.0, %v373
        %v375 = vsub.f32 1.0, %v374
        %v376 = vmul.f32 %v373, %v375
        %v377 = vadd.f32 %v373, %v376
        %vm378 = vweird.f32 %v373
        %v379 = vsel %vm378, %v373, %v377
        %v380 = vmul.f32 %v372, %v379
        %v381 = vsub.f32 %v366, %v380
        %v382 = vmul.f32 %v381, %v381
        %v383 = vsel %vm369, %v382, 0.0
        %384 = vadd.xlane.f32.xlu0 %v383
        %v385 = vpop.xlane.xlu0 %384
        %v386 = vmul.f32 %v385, %v379
        %v387 = vadd.f32 %v386, 1e-05
        %v388 = vrsqrt.pop %v387
        %v389 = vmul.f32 %v388, %v387
        %v390 = vmul.f32 %v389, %v388
        %v391 = vmul.f32 0.5, %v390
        %v392 = vsub.f32 1.5, %v391
        %v393 = vmul.f32 %v388, %v392
        %vm394 = vweird.f32 %v387
        %vm395 = vweird.f32 %v388
        %vm396 = vmor %vm394, %vm395
        %v397 = vsel %vm396, %v388, %v393
        %v398 = vmul.f32 %v381, %v397
        %v400 = vperm.slane %v367, 0
        %v402 = vmul.f32 %v398, %v400
        %v404 = vperm.slane %v368, 0
        %v406 = vadd.f32 %v402, %v404
        %v407 = vld [vmem:[#allocation7] sm:$0xff]
        %v408 = vld [vmem:[#allocation7 + $0x8] sm:$0xff]
        %v409 = vld [vmem:[#allocation7 + $0x10] sm:$0xff]
        %v410 = vld [vmem:[#allocation7 + $0x18] sm:$0xff]
        %v411 = vld [vmem:[%s4] sm:$0x1]
        %v413 = vperm.slane %v411, 0
        %v416 = vsel %vm369, %v406, 0
        %418 = vmatpush.msra.mxu0 0.0
        %419 = vmatpush.msra.mxu0 0.0
        %420 = vmatpush.msra.mxu0 0.0
        %421 = vmatpush.msra.mxu0 0.0
        %422 = vmatpush.msra.mxu0 0.0
        %423 = vmatpush.msra.mxu0 0.0
        %424 = vmatpush.msra.mxu0 0.0
        %425 = vmatpush.msra.mxu0 0.0
        %426 = vmatpush.msra.mxu0 0.0
        %427 = vmatpush.msra.mxu0 0.0
        %428 = vmatpush.msra.mxu0 0.0
        %429 = vmatpush.msra.mxu0 0.0
        %430 = vmatpush.msra.mxu0 %v410
        %431 = vmatpush.msra.mxu0 %v409
        %432 = vmatpush.msra.mxu0 %v408
        %433 = vmatpush.msra.mxu0 %v407
        %434 = vmatmul.f32.gmra.mxu0 %v416
        %v435 = vpop.f32.mrf.mxu0
        %v436 = vadd.f32 %v413, %v435
        %437 = vdwg.mxu0
        %vm438 = vcmask 64512
        %439 = vst.msk [vmem:[%s351] sm:$0xff] %vm438, %v436
        %441 = vrot.lane.b32.xlu0 %v436, 96
        %v442 = vpop.permute.xlu0 %441
        %444 = vst.msk [vmem:[%s358] sm:$0xff] %vm438, %v442
        %445 = vrot.lane.b32.xlu0 %v436, 64
        %v446 = vpop.permute.xlu0 %445
        %448 = vst.msk [vmem:[%s365] sm:$0xff] %vm438, %v446
        %449 = vrot.lane.b32.xlu0 %v436, 120
        %v450 = vpop.permute.xlu0 %449
        %s452 = scalar_lea.vmem %s351, 8 [#allocation8]
        %453 = vst.msk [vmem:[%s452] sm:$0xff] %vm438, %v450
        %454 = vrot.lane.b32.xlu0 %v436, 88
        %v455 = vpop.permute.xlu0 %454
        %s457 = scalar_lea.vmem %s358, 8 [#allocation9]
        %458 = vst.msk [vmem:[%s457] sm:$0xff] %vm438, %v455
        %459 = vrot.lane.b32.xlu0 %v436, 56
        %v460 = vpop.permute.xlu0 %459
        %s462 = scalar_lea.vmem %s365, 8 [#allocation11]
        %463 = vst.msk [vmem:[%s462] sm:$0xff] %vm438, %v460
        %464 = vrot.lane.b32.xlu0 %v436, 112
        %v465 = vpop.permute.xlu0 %464
        %s467 = scalar_lea.vmem %s351, 16 [#allocation8]
        %468 = vst.msk [vmem:[%s467] sm:$0xff] %vm438, %v465
        %469 = vrot.lane.b32.xlu0 %v436, 80
        %v470 = vpop.permute.xlu0 %469
        %s472 = scalar_lea.vmem %s358, 16 [#allocation9]
        %473 = vst.msk [vmem:[%s472] sm:$0xff] %vm438, %v470
        %474 = vrot.lane.b32.xlu0 %v436, 48
        %v475 = vpop.permute.xlu0 %474
        %s477 = scalar_lea.vmem %s365, 16 [#allocation11]
        %478 = vst.msk [vmem:[%s477] sm:$0xff] %vm438, %v475
        %479 = vrot.lane.b32.xlu0 %v436, 104
        %v480 = vpop.permute.xlu0 %479
        %s482 = scalar_lea.vmem %s351, 24 [#allocation8]
        %483 = vst.msk [vmem:[%s482] sm:$0xff] %vm438, %v480
        %484 = vrot.lane.b32.xlu0 %v436, 72
        %v485 = vpop.permute.xlu0 %484
        %s487 = scalar_lea.vmem %s358, 24 [#allocation9]
        %488 = vst.msk [vmem:[%s487] sm:$0xff] %vm438, %v485
        %489 = vrot.lane.b32.xlu0 %v436, 40
        %v490 = vpop.permute.xlu0 %489
        %s492 = scalar_lea.vmem %s365, 24 [#allocation11]
        %493 = vst.msk [vmem:[%s492] sm:$0xff] %vm438, %v490
        %s494 = sand.u32 %s163, 1
        %s495 = scalar_lea.sflag [#allocation4], %s494
        %s496 = sand.u32 %s163, 1
        %s497 = smul.addr %s496, 32
        %s498 = scalar_lea.vmem [#allocation8], %s497
        %s499 = sand.u32 %s29, 1
        %s500 = scalar_lea.sflag [#allocation10], %s499
        %s501 = sand.u32 %s191, 1
        %s502 = smul.addr %s501, 32
        %s503 = scalar_lea.vmem [#allocation9], %s502
        %s504 = sand.u32 %s29, 1
        %s505 = scalar_lea.sflag [#allocation10], %s504
        %s506 = sand.u32 %s219, 1
        %s507 = smul.addr %s506, 32
        %s508 = scalar_lea.vmem [#allocation11], %s507
        // Predicated region
        $region53: #{tpu_custom_call.1} parent=39 // pred_check
          %p509 = pneg %p173
        $region54: #{tpu_custom_call.1} parent=39 // pred_check_branch
          %511 = sbr.rel (%p509) target = $region56
        $region55: #{tpu_custom_call.1} parent=39 // pred_region
          %513 = vsyncadd %s495, 0
          %s514 = smul.addr %s33, 4
          %s515 = sadd.s32 %s34, %s514
          %s516 = smul.addr %s515, 8
          %s517 = scalar_lea.hbm %s5, %s516
          %s518 = sshll.u32 %s498, 4
          %s519 = int_to_ptr.vmem [resolvable:$true] %s518
          %s520 = sshll.u32 %s517, 4
          %s521 = int_to_ptr.hbm [resolvable:$true] %s520
          %526 = dma.vmem_to_hbm [thread:$0]  %s519, 512, %s521, %s495, 128, 128, 8
        $region56: #{tpu_custom_call.1} parent=39 // pred_fallthru
          _
        // Predicated region
        $region57: #{tpu_custom_call.1} parent=39 // pred_check
          %p527 = pneg %p201
        $region58: #{tpu_custom_call.1} parent=39 // pred_check_branch
          %529 = sbr.rel (%p527) target = $region60
        $region59: #{tpu_custom_call.1} parent=39 // pred_region
          %531 = vsyncadd %s500, 0
          %s532 = smul.addr %s33, 4
          %s533 = sadd.s32 %s34, %s532
          %s534 = smul.addr %s533, 8
          %s535 = scalar_lea.hbm %s6, %s534
          %s536 = sshll.u32 %s503, 4
          %s537 = int_to_ptr.vmem [resolvable:$true] %s536
          %s538 = sshll.u32 %s535, 4
          %s539 = int_to_ptr.hbm [resolvable:$true] %s538
          %544 = dma.vmem_to_hbm [thread:$0]  %s537, 512, %s539, %s500, 128, 128, 8
        $region60: #{tpu_custom_call.1} parent=39 // pred_fallthru
          _
        // Predicated region
        $region61: #{tpu_custom_call.1} parent=39 // pred_check
          %p545 = pneg %p229
        $region62: #{tpu_custom_call.1} parent=39 // pred_check_branch
          %547 = sbr.rel (%p545) target = $region64
        $region63: #{tpu_custom_call.1} parent=39 // pred_region
          %549 = vsyncadd %s505, 0
          %s550 = smul.addr %s33, 4
          %s551 = sadd.s32 %s34, %s550
          %s552 = smul.addr %s551, 8
          %s553 = scalar_lea.hbm %s7, %s552
          %s554 = sshll.u32 %s508, 4
          %s555 = int_to_ptr.vmem [resolvable:$true] %s554
          %s556 = sshll.u32 %s553, 4
          %s557 = int_to_ptr.hbm [resolvable:$true] %s556
          %562 = dma.vmem_to_hbm [thread:$0]  %s555, 512, %s557, %s505, 128, 128, 8
        $region64: #{tpu_custom_call.1} parent=39 // pred_fallthru
          _
      $region40: #{tpu_custom_call.1} parent=5 // pred_fallthru
        _
      %p563 = scmp.le.s32.totalorder 2, %s24
      // Predicated region
      $region65: #{tpu_custom_call.1} parent=5 // pred_check
        %p564 = pneg %p563
      $region66: #{tpu_custom_call.1} parent=5 // pred_check_branch
        %566 = sbr.rel (%p564) target = $region68
      $region67: #{tpu_custom_call.1} parent=5 // pred_region
        %s567 = ssub.s32 %s24, 2
        // Predicated region
        $region69: #{tpu_custom_call.1} parent=67 // pred_check
          %p568 = pneg %p179
        $region70: #{tpu_custom_call.1} parent=67 // pred_check_branch
          %570 = sbr.rel (%p568) target = $region72
        $region71: #{tpu_custom_call.1} parent=67 // pred_region
          %s571 = sand.u32 %s164, 1
          %s572 = scalar_lea.sflag [#allocation4], %s571
          %s573 = sand.u32 %s164, 1
          %s574 = smul.addr %s573, 32
          %s575 = scalar_lea.vmem [#allocation8], %s574
          %577 = dma.done %s572, 512
        $region72: #{tpu_custom_call.1} parent=67 // pred_fallthru
          _
        // Predicated region
        $region73: #{tpu_custom_call.1} parent=67 // pred_check
          %p578 = pneg %p207
        $region74: #{tpu_custom_call.1} parent=67 // pred_check_branch
          %580 = sbr.rel (%p578) target = $region76
        $region75: #{tpu_custom_call.1} parent=67 // pred_region
          %s581 = sand.u32 %s30, 1
          %s582 = scalar_lea.sflag [#allocation10], %s581
          %s583 = sand.u32 %s192, 1
          %s584 = smul.addr %s583, 32
          %s585 = scalar_lea.vmem [#allocation9], %s584
          %587 = dma.done %s582, 512
        $region76: #{tpu_custom_call.1} parent=67 // pred_fallthru
          _
        // Predicated region
        $region77: #{tpu_custom_call.1} parent=67 // pred_check
          %p588 = pneg %p235
        $region78: #{tpu_custom_call.1} parent=67 // pred_check_branch
          %590 = sbr.rel (%p588) target = $region80
        $region79: #{tpu_custom_call.1} parent=67 // pred_region
          %s591 = sand.u32 %s30, 1
          %s592 = scalar_lea.sflag [#allocation10], %s591
          %s593 = sand.u32 %s220, 1
          %s594 = smul.addr %s593, 32
          %s595 = scalar_lea.vmem [#allocation11], %s594
          %597 = dma.done %s592, 512
        $region80: #{tpu_custom_call.1} parent=67 // pred_fallthru
          _
      $region68: #{tpu_custom_call.1} parent=5 // pred_fallthru
        _
    $region6: #{tpu_custom_call.1} parent=1 // loop_footer
      %s28 = sadd.s32 1, %s24
    $region7: #{tpu_custom_call.1} parent=1 // loop_footer_branch
      %23 = sbr.rel target = $region3
    $region8: #{tpu_custom_call.1} parent=1 // loop_exit
      _
    %598 = vsyncpa [#allocation3], 1
    %s599 = scalar_lea.sflag [#allocation3], 1
    %600 = vsyncpa %s599, 1
    %601 = vsyncpa [#allocation6], 1
    %602 = vsyncpa [#allocation4], 1
    %s603 = scalar_lea.sflag [#allocation4], 1
    %604 = vsyncpa %s603, 1
    %605 = vsyncpa [#allocation10], 1
    %s606 = scalar_lea.sflag [#allocation10], 1
    %607 = vsyncpa %s606, 1

</llo_original>
